<compile_context>
chip_gen: v5e
topology: v5e:2x2
jax: 0.10.0
libtpu: 0.0.40
codegen_flags: <defaults>
</compile_context>

<pallas_src>
import functools

import jax
import jax.numpy as jnp
from jax.experimental import pallas as pl
from jax.experimental.pallas import tpu as pltpu


def _round_up(x, m):
    return (x + m - 1) // m * m


def _pick_tile(n, max_tile):
    """Largest multiple of 128 that divides n and is <= max_tile."""
    t = min(max_tile, n)
    while n % t != 0:
        t -= 128
    return t


# ---------------------------------------------------------------------------
# Kernel 1: feature transform  XW = X @ W   (computed once per layer)
# ---------------------------------------------------------------------------
def _feature_transform_kernel(x_ref, w_ref, o_ref):
    o_ref[...] = jnp.dot(
        x_ref[...], w_ref[...], preferred_element_type=jnp.float32
    ).astype(o_ref.dtype)


def feature_transform(x, w, *, out_dtype=jnp.bfloat16, max_tm=512):
    n_pad, f_in = x.shape
    f_out = w.shape[1]
    tm = _pick_tile(n_pad, max_tm)
    return pl.pallas_call(
        _feature_transform_kernel,
        out_shape=jax.ShapeDtypeStruct((n_pad, f_out), out_dtype),
        grid_spec=pltpu.PrefetchScalarGridSpec(
            num_scalar_prefetch=0,
            grid=(n_pad // tm,),
            in_specs=[
                pl.BlockSpec((tm, f_in), lambda i: (i, 0)),
                pl.BlockSpec((f_in, f_out), lambda i: (0, 0)),
            ],
            out_specs=pl.BlockSpec((tm, f_out), lambda i: (i, 0)),
        ),
        compiler_params=pltpu.CompilerParams(
            dimension_semantics=("parallel",),
        ),
    )(x, w)


# ---------------------------------------------------------------------------
# Kernel 2: tiled aggregation  out = relu?( adj @ XW + b )
#   grid = (row tiles, contraction tiles); f32 accumulator in VMEM scratch.
# ---------------------------------------------------------------------------
def _aggregate_kernel(adj_ref, xw_ref, b_ref, o_ref, acc_ref, *, apply_relu):
    k = pl.program_id(1)

    @pl.when(k == 0)
    def _():
        acc_ref[...] = jnp.zeros_like(acc_ref)

    acc_ref[...] += jnp.dot(
        adj_ref[...], xw_ref[...], preferred_element_type=jnp.float32
    )

    @pl.when(k == pl.num_programs(1) - 1)
    def _():
        out = acc_ref[...] + b_ref[...]
        if apply_relu:
            out = jnp.maximum(out, 0.0)
        o_ref[...] = out.astype(o_ref.dtype)


def aggregate(adj, xw, b, *, apply_relu, max_tm=512, max_tk=512,
              out_dtype=jnp.float32):
    n_pad = adj.shape[0]
    f_out = xw.shape[1]
    tm = _pick_tile(n_pad, max_tm)
    tk = _pick_tile(n_pad, max_tk)

    adj_bytes = adj.size * adj.dtype.itemsize
    xw_bytes = xw.size * xw.dtype.itemsize
    out_bytes = n_pad * f_out * jnp.dtype(out_dtype).itemsize
    cost = pl.CostEstimate(
        flops=2 * n_pad * n_pad * f_out,
        transcendentals=0,
        bytes_accessed=adj_bytes + xw_bytes + out_bytes,
    )

    # Double-buffered input tiles + accumulator + output tile, with headroom.
    working_set = (
        2 * tm * tk * adj.dtype.itemsize
        + 2 * tk * f_out * xw.dtype.itemsize
        + tm * f_out * 4
        + 2 * tm * f_out * jnp.dtype(out_dtype).itemsize
        + 2 * f_out * 4
    )
    vmem_limit = int(min(48 * 1024 * 1024,
                         max(4 * working_set, 16 * 1024 * 1024)))

    kernel = functools.partial(_aggregate_kernel, apply_relu=apply_relu)
    return pl.pallas_call(
        kernel,
        out_shape=jax.ShapeDtypeStruct((n_pad, f_out), out_dtype),
        grid_spec=pltpu.PrefetchScalarGridSpec(
            num_scalar_prefetch=0,
            grid=(n_pad // tm, n_pad // tk),
            in_specs=[
                pl.BlockSpec((tm, tk), lambda i, k: (i, k)),      # adj tile
                pl.BlockSpec((tk, f_out), lambda i, k: (k, 0)),   # XW tile
                pl.BlockSpec((1, f_out), lambda i, k: (0, 0)),    # bias
            ],
            out_specs=pl.BlockSpec((tm, f_out), lambda i, k: (i, 0)),
            scratch_shapes=[pltpu.VMEM((tm, f_out), jnp.float32)],
        ),
        compiler_params=pltpu.CompilerParams(
            dimension_semantics=("parallel", "arbitrary"),
            vmem_limit_bytes=vmem_limit,
        ),
        cost_estimate=cost,
    )(adj, xw, b)


# ---------------------------------------------------------------------------
# Glue: dense symmetric-normalized adjacency with self loops (PyG gcn_norm)
# ---------------------------------------------------------------------------
def build_norm_adj(edge_index, num_nodes):
    src = edge_index[0]
    dst = edge_index[1]
    loop = jnp.arange(num_nodes, dtype=edge_index.dtype)
    src = jnp.concatenate([src, loop])
    dst = jnp.concatenate([dst, loop])
    adj = jnp.zeros((num_nodes, num_nodes), jnp.float32).at[dst, src].add(1.0)
    deg = adj.sum(axis=1)
    deg_inv_sqrt = jnp.where(deg > 0.0, 1.0 / jnp.sqrt(deg), 0.0)
    return deg_inv_sqrt[:, None] * adj * deg_inv_sqrt[None, :]


# ---------------------------------------------------------------------------
# GCN forward: matches the PyTorch module (inference mode: dropout = identity)
# ---------------------------------------------------------------------------
def gcn_forward(x, edge_index, params, *, max_tm=512, max_tk=512):
    num_nodes, in_channels = x.shape
    out_channels = params[-1][0].shape[1]
    n_pad = _round_up(num_nodes, 128)

    # Build + pad + cast the normalized adjacency ONCE; reused by every layer.
    adj = build_norm_adj(edge_index, num_nodes)
    adj = jnp.pad(adj, ((0, n_pad - num_nodes), (0, n_pad - num_nodes)))
    adj = adj.astype(jnp.bfloat16)

    # Pad node features: rows to n_pad, feature dim to a multiple of 128.
    f_pad0 = _round_up(in_channels, 128)
    h = jnp.pad(x, ((0, n_pad - num_nodes), (0, f_pad0 - in_channels)))

    n_layers = len(params)
    for i, (w, b) in enumerate(params):
        f_in, f_out = w.shape
        f_in_pad = _round_up(f_in, 128)
        f_out_pad = _round_up(f_out, 128)
        w_p = jnp.pad(w, ((0, f_in_pad - f_in), (0, f_out_pad - f_out)))
        b_p = jnp.pad(b, (0, f_out_pad - f_out)).reshape(1, f_out_pad)

        xw = feature_transform(h, w_p, out_dtype=jnp.bfloat16, max_tm=max_tm)
        is_last = i == n_layers - 1
        h = aggregate(adj, xw, b_p, apply_relu=not is_last,
                      max_tm=max_tm, max_tk=max_tk, out_dtype=jnp.float32)
        # F.dropout(..., training=False) is a no-op at inference.

    return h[:num_nodes, :out_channels]


# ---------------------------------------------------------------------------
# Plain-JAX f32 reference (for validation of the bf16 kernel path)
# ---------------------------------------------------------------------------
def gcn_reference(x, edge_index, params):
    adj = build_norm_adj(edge_index, x.shape[0])
    h = x
    n_layers = len(params)
    for i, (w, b) in enumerate(params):
        h = adj @ (h @ w) + b
        if i < n_layers - 1:
            h = jnp.maximum(h, 0.0)
    return h


def init_params(key, in_channels, hidden_channels, out_channels, num_layers):
    """Deterministic glorot-style init matching the GCNConv weight shapes."""
    dims = [in_channels] + [hidden_channels] * (num_layers - 1) + [out_channels]
    params = []
    for i in range(num_layers):
        key, wk = jax.random.split(key)
        fan_in, fan_out = dims[i], dims[i + 1]
        limit = jnp.sqrt(6.0 / (fan_in + fan_out))
        w = jax.random.uniform(wk, (fan_in, fan_out), jnp.float32, -limit, limit)
        b = jnp.zeros((fan_out,), jnp.float32)
        params.append((w, b))
    return params


if __name__ == "__main__":
    # Small synthetic problem consistent with the module's forward signature.
    num_nodes = 64
    num_edges = 256
    in_channels = 16
    hidden_channels = 32
    out_channels = 8
    num_layers = 3
    dropout = 0.5  # inference mode -> identity

    key = jax.random.PRNGKey(0)
    kx, ke, kp = jax.random.split(key, 3)

    x = jax.random.normal(kx, (num_nodes, in_channels), jnp.float32)
    edge_index = jax.random.randint(ke, (2, num_edges), 0, num_nodes, jnp.int32)

    params = init_params(kp, in_channels, hidden_channels, out_channels, num_layers)

    out = gcn_forward(x, edge_index, params)
    out = jax.block_until_ready(out)
    assert out.shape == (num_nodes, out_channels)

    # Validate bf16 adjacency / XW path against an f32 reference (generous tol).
    ref = gcn_reference(x, edge_index, params)
    assert bool(jnp.all(jnp.isfinite(out)))
    assert bool(jnp.allclose(out, ref, rtol=1e-1, atol=1e-1))

    print("KERNEL_OK")
</pallas_src>

<mosaic_0001>
module attributes {stable_mosaic.version = 11 : i64} {
  func.func @_feature_transform_kernel(%arg0: i32, %arg1: memref<128x128xf32, #tpu.memory_space<vmem>>, %arg2: memref<128x128xf32, #tpu.memory_space<vmem>>, %arg3: memref<128x128xbf16, #tpu.memory_space<vmem>>) attributes {dimension_semantics = [#tpu.dimension_semantics<parallel>], iteration_bounds = array<i64: 1>, scalar_prefetch = 0 : i64, scratch_operands = 0 : i64, tpu.core_type = #tpu.core_type<tc>, window_params = [{transform_indices = @transform_0, window_bounds = array<i64: 128, 128>}, {pipeline_mode = #tpu.pipeline_mode<synchronous>, transform_indices = @transform_1, window_bounds = array<i64: 128, 128>}, {transform_indices = @transform_2, window_bounds = array<i64: 128, 128>}]} {
    %c0 = arith.constant 0 : index
    %c0_0 = arith.constant 0 : index
    %0 = vector.load %arg1[%c0, %c0_0] : memref<128x128xf32, #tpu.memory_space<vmem>>, vector<128x128xf32>
    %c0_1 = arith.constant 0 : index
    %c0_2 = arith.constant 0 : index
    %1 = vector.load %arg2[%c0_1, %c0_2] : memref<128x128xf32, #tpu.memory_space<vmem>>, vector<128x128xf32>
    %cst = arith.constant dense<0.000000e+00> : vector<128x128xf32>
    %2 = tpu.matmul %0, %1, %cst {dimension_numbers = #tpu.dot_dimension_numbers<[1], [0], [0], [1], [0, 0, 1, 1], [], []>} : vector<128x128xf32>, vector<128x128xf32>, vector<128x128xf32> -> vector<128x128xf32>
    %3 = arith.truncf %2 : vector<128x128xf32> to vector<128x128xbf16>
    %c0_3 = arith.constant 0 : index
    %c0_4 = arith.constant 0 : index
    %4 = vector.load %arg3[%c0_3, %c0_4] : memref<128x128xbf16, #tpu.memory_space<vmem>>, vector<128x128xbf16>
    tpu.vector_store %arg3[%c0_3, %c0_4], %3 {strides = array<i32>} : memref<128x128xbf16, #tpu.memory_space<vmem>>, vector<128x128xbf16>,
    return
  }
  func.func @transform_0(%arg0: i32) -> (i32, i32) {
    %c0_i32 = arith.constant 0 : i32
    %c0_i32_0 = arith.constant 0 : i32
    return %arg0, %c0_i32 : i32, i32
  }
  func.func @transform_1(%arg0: i32) -> (i32, i32) {
    %c0_i32 = arith.constant 0 : i32
    %c0_i32_0 = arith.constant 0 : i32
    %c0_i32_1 = arith.constant 0 : i32
    return %c0_i32, %c0_i32_0 : i32, i32
  }
  func.func @transform_2(%arg0: i32) -> (i32, i32) {
    %c0_i32 = arith.constant 0 : i32
    %c0_i32_0 = arith.constant 0 : i32
    return %arg0, %c0_i32 : i32, i32
  }
}

</mosaic_0001>

<llo_original>
// kernel: tpu_custom_call.1
$region0: #{tpu_custom_call.1}
  #allocation0 [shape = 'u32[]', space=smem, size = 0x4, offset = 0x4, fixed_abs, tag = 'smem constant byte address 0x4 - core index']
  #allocation1 [shape = 'u32[72,128]{1,0:T(1,128)}', space=vmem, size = 0x9000, scoped, tag = 'internal scratch']
  %s0 = inlined_call_operand.hbm [shape: f32[128,128], index: 0, kind: input, shape index: {}]
  %s1 = inlined_call_operand.hbm [shape: f32[128,128], index: 1, kind: input, shape index: {}]
  %s2 = inlined_call_operand.hbm [shape: bf16[128,128], index: 2, kind: output, shape index: {}]
  %s3 = sld [smem:[#allocation0]]
  $region26: #{tpu_custom_call.1} parent=0
    _
  %s5 = ssub.s32 1, %s3
  %s6 = scalar_select 0, %s5, %s3
  $region1: #{tpu_custom_call.1} parent=0
    #allocation2 [shape = 'u8[65536]{0}', space=vmem, size = 0x10000, scoped, tag = 'input window, operand 0, single buffered']
    #allocation3 [shape = 's32[1]{0}', space=sflag, size = 0x4, scoped, tag = 'scoped memory for tpu_custom_call.1']
    #allocation4 [shape = 's32[1]{0}', space=sflag, size = 0x4, scoped, tag = 'scoped memory for tpu_custom_call.1']
    #allocation5 [shape = 'u8[65536]{0}', space=vmem, size = 0x10000, scoped, tag = 'input window, operand 1, single buffered']
    #allocation6 [shape = 's32[1]{0}', space=sflag, size = 0x4, scoped, tag = 'scoped memory for tpu_custom_call.1']
    #allocation7 [shape = 'u8[32768]{0}', space=vmem, size = 0x8000, scoped, tag = 'output window, operand 0, single buffered']
    %7 = vsyncpa [#allocation3], 0
    %8 = vsyncpa [#allocation6], 0
    %9 = vsyncpa [#allocation4], 0
    // Predicated region
    $region2: #{tpu_custom_call.1} parent=1 // pred_check
      _
    $region3: #{tpu_custom_call.1} parent=1 // pred_check_branch
      %11 = sbr.rel (0) target = $region5
    $region4: #{tpu_custom_call.1} parent=1 // pred_region
      %13 = vsyncadd [#allocation3], 0
      %s14 = sshll.u32 %s0, 4
      %s15 = int_to_ptr.hbm [resolvable:$true] %s14
      %s16 = sshll.u32 [#allocation2], 4
      %s17 = int_to_ptr.vmem [resolvable:$true] %s16
      %22 = dma.hbm_to_vmem [thread:$0]  %s15, 2048, %s17, [#allocation3], 128, 128, 8
    $region5: #{tpu_custom_call.1} parent=1 // pred_fallthru
      _
    // Predicated region
    $region6: #{tpu_custom_call.1} parent=1 // pred_check
      _
    $region7: #{tpu_custom_call.1} parent=1 // pred_check_branch
      %24 = sbr.rel (0) target = $region9
    $region8: #{tpu_custom_call.1} parent=1 // pred_region
      %26 = vsyncadd [#allocation6], 0
      %s27 = sshll.u32 %s1, 4
      %s28 = int_to_ptr.hbm [resolvable:$true] %s27
      %s29 = sshll.u32 [#allocation5], 4
      %s30 = int_to_ptr.vmem [resolvable:$true] %s29
      %35 = dma.hbm_to_vmem [thread:$0]  %s28, 2048, %s30, [#allocation6], 128, 128, 8
    $region9: #{tpu_custom_call.1} parent=1 // pred_fallthru
      _
    // Predicated region
    $region10: #{tpu_custom_call.1} parent=1 // pred_check
      _
    $region11: #{tpu_custom_call.1} parent=1 // pred_check_branch
      %37 = sbr.rel (0) target = $region13
    $region12: #{tpu_custom_call.1} parent=1 // pred_region
      %39 = dma.done [#allocation3], 2048
    $region13: #{tpu_custom_call.1} parent=1 // pred_fallthru
      _
    // Predicated region
    $region14: #{tpu_custom_call.1} parent=1 // pred_check
      _
    $region15: #{tpu_custom_call.1} parent=1 // pred_check_branch
      %41 = sbr.rel (0) target = $region17
    $region16: #{tpu_custom_call.1} parent=1 // pred_region
      %43 = dma.done [#allocation6], 2048
    $region17: #{tpu_custom_call.1} parent=1 // pred_fallthru
      _
    %v44 = vld [vmem:[#allocation2] sm:$0xff]
    %v45 = vld [vmem:[#allocation2 + $0x8] sm:$0xff]
    %v46 = vld [vmem:[#allocation2 + $0x10] sm:$0xff]
    %v47 = vld [vmem:[#allocation2 + $0x18] sm:$0xff]
    %v48 = vld [vmem:[#allocation2 + $0x20] sm:$0xff]
    %v49 = vld [vmem:[#allocation2 + $0x28] sm:$0xff]
    %v50 = vld [vmem:[#allocation2 + $0x30] sm:$0xff]
    %v51 = vld [vmem:[#allocation2 + $0x38] sm:$0xff]
    %v52 = vld [vmem:[#allocation2 + $0x40] sm:$0xff]
    %v53 = vld [vmem:[#allocation2 + $0x48] sm:$0xff]
    %v54 = vld [vmem:[#allocation2 + $0x50] sm:$0xff]
    %v55 = vld [vmem:[#allocation2 + $0x58] sm:$0xff]
    %v56 = vld [vmem:[#allocation2 + $0x60] sm:$0xff]
    %v57 = vld [vmem:[#allocation2 + $0x68] sm:$0xff]
    %v58 = vld [vmem:[#allocation2 + $0x70] sm:$0xff]
    %v59 = vld [vmem:[#allocation2 + $0x78] sm:$0xff]
    %v60 = vld [vmem:[#allocation5] sm:$0xff]
    %v61 = vld [vmem:[#allocation5 + $0x8] sm:$0xff]
    %v62 = vld [vmem:[#allocation5 + $0x10] sm:$0xff]
    %v63 = vld [vmem:[#allocation5 + $0x18] sm:$0xff]
    %v64 = vld [vmem:[#allocation5 + $0x20] sm:$0xff]
    %v65 = vld [vmem:[#allocation5 + $0x28] sm:$0xff]
    %v66 = vld [vmem:[#allocation5 + $0x30] sm:$0xff]
    %v67 = vld [vmem:[#allocation5 + $0x38] sm:$0xff]
    %v68 = vld [vmem:[#allocation5 + $0x40] sm:$0xff]
    %v69 = vld [vmem:[#allocation5 + $0x48] sm:$0xff]
    %v70 = vld [vmem:[#allocation5 + $0x50] sm:$0xff]
    %v71 = vld [vmem:[#allocation5 + $0x58] sm:$0xff]
    %v72 = vld [vmem:[#allocation5 + $0x60] sm:$0xff]
    %v73 = vld [vmem:[#allocation5 + $0x68] sm:$0xff]
    %v74 = vld [vmem:[#allocation5 + $0x70] sm:$0xff]
    %v75 = vld [vmem:[#allocation5 + $0x78] sm:$0xff]
    %76 = vmatpush.msra.mxu0 %v75
    %77 = vmatpush.msra.mxu0 %v74
    %78 = vmatpush.msra.mxu0 %v73
    %79 = vmatpush.msra.mxu0 %v72
    %80 = vmatpush.msra.mxu0 %v71
    %81 = vmatpush.msra.mxu0 %v70
    %82 = vmatpush.msra.mxu0 %v69
    %83 = vmatpush.msra.mxu0 %v68
    %84 = vmatpush.msra.mxu0 %v67
    %85 = vmatpush.msra.mxu0 %v66
    %86 = vmatpush.msra.mxu0 %v65
    %87 = vmatpush.msra.mxu0 %v64
    %88 = vmatpush.msra.mxu0 %v63
    %89 = vmatpush.msra.mxu0 %v62
    %90 = vmatpush.msra.mxu0 %v61
    %91 = vmatpush.msra.mxu0 %v60
    %92 = vmatmul.f32.gmra.mxu0 %v44
    %v93 = vpop.f32.mrf.mxu0
    %v94 = vadd.f32 0.0, %v93
    %95 = vmatmul.f32.gmra.mxu0 %v45
    %v96 = vpop.f32.mrf.mxu0
    %v97 = vadd.f32 0.0, %v96
    %98 = vmatmul.f32.gmra.mxu0 %v46
    %v99 = vpop.f32.mrf.mxu0
    %v100 = vadd.f32 0.0, %v99
    %101 = vmatmul.f32.gmra.mxu0 %v47
    %v102 = vpop.f32.mrf.mxu0
    %v103 = vadd.f32 0.0, %v102
    %104 = vmatmul.f32.gmra.mxu0 %v48
    %v105 = vpop.f32.mrf.mxu0
    %v106 = vadd.f32 0.0, %v105
    %107 = vmatmul.f32.gmra.mxu0 %v49
    %v108 = vpop.f32.mrf.mxu0
    %v109 = vadd.f32 0.0, %v108
    %110 = vmatmul.f32.gmra.mxu0 %v50
    %v111 = vpop.f32.mrf.mxu0
    %v112 = vadd.f32 0.0, %v111
    %113 = vmatmul.f32.gmra.mxu0 %v51
    %v114 = vpop.f32.mrf.mxu0
    %v115 = vadd.f32 0.0, %v114
    %116 = vmatmul.f32.gmra.mxu0 %v52
    %v117 = vpop.f32.mrf.mxu0
    %v118 = vadd.f32 0.0, %v117
    %119 = vmatmul.f32.gmra.mxu0 %v53
    %v120 = vpop.f32.mrf.mxu0
    %v121 = vadd.f32 0.0, %v120
    %122 = vmatmul.f32.gmra.mxu0 %v54
    %v123 = vpop.f32.mrf.mxu0
    %v124 = vadd.f32 0.0, %v123
    %125 = vmatmul.f32.gmra.mxu0 %v55
    %v126 = vpop.f32.mrf.mxu0
    %v127 = vadd.f32 0.0, %v126
    %128 = vmatmul.f32.gmra.mxu0 %v56
    %v129 = vpop.f32.mrf.mxu0
    %v130 = vadd.f32 0.0, %v129
    %131 = vmatmul.f32.gmra.mxu0 %v57
    %v132 = vpop.f32.mrf.mxu0
    %v133 = vadd.f32 0.0, %v132
    %134 = vmatmul.f32.gmra.mxu0 %v58
    %v135 = vpop.f32.mrf.mxu0
    %v136 = vadd.f32 0.0, %v135
    %137 = vmatmul.f32.gmra.mxu0 %v59
    %v138 = vpop.f32.mrf.mxu0
    %v139 = vadd.f32 0.0, %v138
    %140 = vdwg.mxu0
    %v141 = vpack.c.bf16 %v94, %v94
    %v142 = vpack.c.bf16 %v97, %v97
    %v143 = vpack.c.bf16 %v100, %v100
    %v144 = vpack.c.bf16 %v103, %v103
    %v145 = vpack.c.bf16 %v106, %v106
    %v146 = vpack.c.bf16 %v109, %v109
    %v147 = vpack.c.bf16 %v112, %v112
    %v148 = vpack.c.bf16 %v115, %v115
    %v149 = vpack.c.bf16 %v118, %v118
    %v150 = vpack.c.bf16 %v121, %v121
    %v151 = vpack.c.bf16 %v124, %v124
    %v152 = vpack.c.bf16 %v127, %v127
    %v153 = vpack.c.bf16 %v130, %v130
    %v154 = vpack.c.bf16 %v133, %v133
    %v155 = vpack.c.bf16 %v136, %v136
    %v156 = vpack.c.bf16 %v139, %v139
    %157 = vst [vmem:[#allocation7] sm:$0xf] %v141
    %158 = vst [vmem:[#allocation7 + $0x4] sm:$0xf] %v142
    %159 = vst [vmem:[#allocation7 + $0x8] sm:$0xf] %v143
    %160 = vst [vmem:[#allocation7 + $0xc] sm:$0xf] %v144
    %161 = vst [vmem:[#allocation7 + $0x10] sm:$0xf] %v145
    %162 = vst [vmem:[#allocation7 + $0x14] sm:$0xf] %v146
    %163 = vst [vmem:[#allocation7 + $0x18] sm:$0xf] %v147
    %164 = vst [vmem:[#allocation7 + $0x1c] sm:$0xf] %v148
    %165 = vst [vmem:[#allocation7 + $0x20] sm:$0xf] %v149
    %166 = vst [vmem:[#allocation7 + $0x24] sm:$0xf] %v150
    %167 = vst [vmem:[#allocation7 + $0x28] sm:$0xf] %v151
    %168 = vst [vmem:[#allocation7 + $0x2c] sm:$0xf] %v152
    %169 = vst [vmem:[#allocation7 + $0x30] sm:$0xf] %v153
    %170 = vst [vmem:[#allocation7 + $0x34] sm:$0xf] %v154
    %171 = vst [vmem:[#allocation7 + $0x38] sm:$0xf] %v155
    %172 = vst [vmem:[#allocation7 + $0x3c] sm:$0xf] %v156
    // Predicated region
    $region18: #{tpu_custom_call.1} parent=1 // pred_check
      _
    $region19: #{tpu_custom_call.1} parent=1 // pred_check_branch
      %174 = sbr.rel (0) target = $region21
    $region20: #{tpu_custom_call.1} parent=1 // pred_region
      %176 = vsyncadd [#allocation4], 0
      %s177 = sshll.u32 [#allocation7], 4
      %s178 = int_to_ptr.vmem [resolvable:$true] %s177
      %s179 = sshll.u32 %s2, 4
      %s180 = int_to_ptr.hbm [resolvable:$true] %s179
      %185 = dma.vmem_to_hbm [thread:$0]  %s178, 1024, %s180, [#allocation4], 64, 64, 4
    $region21: #{tpu_custom_call.1} parent=1 // pred_fallthru
      _
    // Predicated region
    $region22: #{tpu_custom_call.1} parent=1 // pred_check
      _
    $region23: #{tpu_custom_call.1} parent=1 // pred_check_branch
      %187 = sbr.rel (0) target = $region25
    $region24: #{tpu_custom_call.1} parent=1 // pred_region
      %189 = dma.done [#allocation4], 1024
    $region25: #{tpu_custom_call.1} parent=1 // pred_fallthru
      _
    %190 = vsyncpa [#allocation3], 1
    %191 = vsyncpa [#allocation6], 1
    %192 = vsyncpa [#allocation4], 1

</llo_original>
